<compile_context>
chip_gen: v7x
topology: tpu7x:2x2x1
jax: 0.10.0
libtpu: 0.0.40
codegen_flags: <defaults>
</compile_context>

<pallas_src>
import jax
import jax.numpy as jnp
from jax.experimental import pallas as pl
from jax.experimental.pallas import tpu as pltpu

PW_EPS = 1e-6      # F.pairwise_distance default eps (added to the difference)
_LANES = 128
_F32 = 4


def _pairwise_distance_kernel(x1_ref, x2_ref, dist_ref):
    """dist_ref[(1, tb)] = ||x1 - x2 + 1e-6||_2 per row of the (tb, D) tile."""
    # Cast to f32 for compute (required on v5e: no bf16 VPU path; also keeps the
    # reduction accurate for bf16 inputs). No-op for f32 inputs.
    x1 = x1_ref[...].astype(jnp.float32)            # (tb, D)
    x2 = x2_ref[...].astype(jnp.float32)            # (tb, D)
    diff = x1 - x2 + PW_EPS
    d2 = jnp.sum(diff * diff, axis=1)               # (tb,)
    # Lane-dense store: (tb,) -> (1, tb). The sublane->lane relayout is XLU work
    # (a free slot in this DMA-bound kernel) and turns tb/8 masked vst.msk
    # stores into dense vst.
    dist_ref[...] = jnp.sqrt(d2)[None, :]


def _vmem_capacity_bytes():
    """Per-core VMEM capacity; conservative fallback if the query fails."""
    try:
        cap = getattr(pltpu.get_tpu_info(), "vmem_capacity_bytes", None)
        if cap:
            return int(cap)
    except Exception:
        pass
    return 64 << 20  # v7x physical VMEM per TensorCore (smallest of the fleet)


def _round_up(x, m):
    return ((x + m - 1) // m) * m


def _round_down(x, m):
    return (x // m) * m


def _per_row_vmem_bytes(D, itemsize):
    # Per-step working set per batch row:
    #   2 inputs x 2 pipeline buffers            -> 4 * D * itemsize
    #   f32 temporaries (x1, x2, diff, diff^2)   -> 4 * D * 4
    #   dist lane + its double buffer (approx)   -> 4 * 4
    return D * (4 * itemsize + 4 * _F32) + 4 * _F32


def _pick_batch_tile(B, D, itemsize, cap_bytes, max_in_tile_bytes=8 << 20):
    """Largest lane-aligned (multiple-of-128) batch tile whose per-step working
    set fits ~70% of VMEM, with each input tile capped at ~8 MiB (amortizes the
    ~0.35 us/step pipeline overhead on v5e/v6e; the VMEM budget is what binds
    on v7x's 64 MiB)."""
    budget = int(cap_bytes * 0.7)
    tb = budget // _per_row_vmem_bytes(D, itemsize)
    tb = min(tb, max_in_tile_bytes // max(1, D * itemsize))
    tb = max(_LANES, _round_down(tb, _LANES))
    # TODO(synk): for extremely large D (single 128-row tile > budget), chunk the
    # D reduction in-kernel with a fori_loop instead of relying on vmem_limit.
    return tb


def contrastive_loss(x1, x2, target, margin=1.5, size_average=True, tb=None):
    """Returns (loss_scalar, dist[B]) matching ContrastiveLoss.forward."""
    del size_average  # unused by the reference forward (always mean)
    B, D = x1.shape
    in_dtype = x1.dtype
    itemsize = jnp.dtype(in_dtype).itemsize
    cap = _vmem_capacity_bytes()

    if tb is None:
        tb = _pick_batch_tile(B, D, itemsize, cap)
    if tb >= B:
        tb = B                 # single full-extent block: always a legal block shape
    else:
        assert tb % _LANES == 0, "batch tile must be a multiple of 128 (or >= B)"

    # Decouple tb from B's divisors: zero-pad a ragged tail (pad rows produce a
    # harmless dist ~ sqrt(D)*1e-6 that is sliced off below). No-op when tb | B.
    Bp = B if tb == B else _round_up(B, tb)
    if Bp != B:
        pad = Bp - B
        x1 = jnp.pad(x1, ((0, pad), (0, 0)))
        x2 = jnp.pad(x2, ((0, pad), (0, 0)))
    n_tiles = Bp // tb

    # VMEM budget including the full-tile f32 temporaries, plus slack; clipped
    # to the physical capacity.
    work = tb * _per_row_vmem_bytes(D, itemsize) + (2 << 20)
    vmem_limit = int(min(cap, max(32 << 20, work + (8 << 20))))

    dist_row = pl.pallas_call(
        _pairwise_distance_kernel,
        out_shape=jax.ShapeDtypeStruct((1, Bp), jnp.float32),
        grid_spec=pltpu.PrefetchScalarGridSpec(
            num_scalar_prefetch=0,
            grid=(n_tiles,),
            in_specs=[
                pl.BlockSpec((tb, D), lambda i: (i, 0)),
                pl.BlockSpec((tb, D), lambda i: (i, 0)),
            ],
            out_specs=pl.BlockSpec((1, tb), lambda i: (0, i)),
        ),
        compiler_params=pltpu.CompilerParams(
            dimension_semantics=("parallel",),   # no cross-step state
            vmem_limit_bytes=vmem_limit),
    )(x1, x2)

    dist = dist_row[0, :B]                       # (B,) f32
    # Trivial O(B) loss epilogue wrapper-side (fused by XLA); matches the
    # reference exactly: squares dist after the sqrt.
    t = target.reshape(B).astype(jnp.float32)
    hinge = jnp.maximum(float(margin) - dist, 0.0)
    loss = 0.5 * jnp.mean(t * dist * dist + (1.0 - t) * hinge * hinge)
    return loss, dist.astype(in_dtype)           # dist in input dtype, like PyTorch


def _reference(x1, x2, target, margin=1.5):
    diff = x1.astype(jnp.float32) - x2.astype(jnp.float32) + PW_EPS
    dist = jnp.sqrt(jnp.sum(diff * diff, axis=-1))
    t = target.astype(jnp.float32)
    loss = 0.5 * jnp.mean(t * dist ** 2 +
                          (1.0 - t) * jnp.maximum(margin - dist, 0.0) ** 2)
    return loss, dist


if __name__ == "__main__":
    key = jax.random.PRNGKey(0)
    k1, k2, k3 = jax.random.split(key, 3)

    # Case 1: module-scale small shapes (batch=8 embedding pairs of dim 32);
    # single full-extent block.
    B, D = 8, 32
    x1 = jax.random.normal(k1, (B, D), dtype=jnp.float32)
    x2 = jax.random.normal(k2, (B, D), dtype=jnp.float32)
    target = jax.random.bernoulli(k3, 0.5, (B,)).astype(jnp.float32)

    loss, dist = contrastive_loss(x1, x2, target, margin=1.5)
    jax.block_until_ready((loss, dist))
    ref_loss, ref_dist = _reference(x1, x2, target, margin=1.5)
    assert jnp.allclose(loss, ref_loss, rtol=1e-5, atol=1e-5), (loss, ref_loss)
    assert jnp.allclose(dist, ref_dist, rtol=1e-5, atol=1e-5)

    # Case 2: multi-tile grid with a ragged tail (B=300 not divisible by tb=128)
    # exercising the padded-tail path and the lane-dense tiled output.
    B2, D2 = 300, 32
    x1b = jax.random.normal(k1, (B2, D2), dtype=jnp.float32)
    x2b = jax.random.normal(k2, (B2, D2), dtype=jnp.float32)
    tgtb = jax.random.bernoulli(k3, 0.5, (B2,)).astype(jnp.float32)
    loss2, dist2 = contrastive_loss(x1b, x2b, tgtb, margin=1.5, tb=128)
    jax.block_until_ready((loss2, dist2))
    ref_loss2, ref_dist2 = _reference(x1b, x2b, tgtb, margin=1.5)
    assert jnp.allclose(loss2, ref_loss2, rtol=1e-5, atol=1e-5)
    assert jnp.allclose(dist2, ref_dist2, rtol=1e-5, atol=1e-5)

    print("KERNEL_OK")
</pallas_src>

<mosaic_0001>
module attributes {stable_mosaic.version = 11 : i64} {
  func.func @_pairwise_distance_kernel(%arg0: i32, %arg1: memref<8x32xf32, #tpu.memory_space<vmem>>, %arg2: memref<8x32xf32, #tpu.memory_space<vmem>>, %arg3: memref<1x8xf32, #tpu.memory_space<vmem>>) attributes {dimension_semantics = [#tpu.dimension_semantics<parallel>], iteration_bounds = array<i64: 1>, scalar_prefetch = 0 : i64, scratch_operands = 0 : i64, tpu.core_type = #tpu.core_type<tc>, window_params = [{transform_indices = @transform_0, window_bounds = array<i64: 8, 32>}, {transform_indices = @transform_1, window_bounds = array<i64: 8, 32>}, {transform_indices = @transform_2, window_bounds = array<i64: 1, 8>}]} {
    %c0 = arith.constant 0 : index
    %c0_0 = arith.constant 0 : index
    %0 = vector.load %arg1[%c0, %c0_0] : memref<8x32xf32, #tpu.memory_space<vmem>>, vector<8x32xf32>
    %c0_1 = arith.constant 0 : index
    %c0_2 = arith.constant 0 : index
    %1 = vector.load %arg2[%c0_1, %c0_2] : memref<8x32xf32, #tpu.memory_space<vmem>>, vector<8x32xf32>
    %2 = arith.subf %0, %1 : vector<8x32xf32>
    %cst = arith.constant 9.99999997E-7 : f32
    %3 = vector.broadcast %cst : f32 to vector<8x32xf32>
    %4 = arith.addf %2, %3 : vector<8x32xf32>
    %5 = arith.mulf %4, %4 : vector<8x32xf32>
    %cst_3 = arith.constant dense<0.000000e+00> : vector<8xf32>
    %6 = vector.multi_reduction <add>, %5, %cst_3 [1] : vector<8x32xf32> to vector<8xf32>
    %7 = math.sqrt %6 : vector<8xf32>
    %8 = vector.shape_cast %7 : vector<8xf32> to vector<1x8xf32>
    %c0_4 = arith.constant 0 : index
    %c0_5 = arith.constant 0 : index
    %9 = vector.load %arg3[%c0_4, %c0_5] : memref<1x8xf32, #tpu.memory_space<vmem>>, vector<1x8xf32>
    tpu.vector_store %arg3[%c0_4, %c0_5], %8 {strides = array<i32>} : memref<1x8xf32, #tpu.memory_space<vmem>>, vector<1x8xf32>,
    return
  }
  func.func @transform_0(%arg0: i32) -> (i32, i32) {
    %c0_i32 = arith.constant 0 : i32
    %c0_i32_0 = arith.constant 0 : i32
    return %arg0, %c0_i32 : i32, i32
  }
  func.func @transform_1(%arg0: i32) -> (i32, i32) {
    %c0_i32 = arith.constant 0 : i32
    %c0_i32_0 = arith.constant 0 : i32
    return %arg0, %c0_i32 : i32, i32
  }
  func.func @transform_2(%arg0: i32) -> (i32, i32) {
    %c0_i32 = arith.constant 0 : i32
    %c0_i32_0 = arith.constant 0 : i32
    return %c0_i32, %arg0 : i32, i32
  }
}

</mosaic_0001>

<llo_original>
// kernel: tpu_custom_call.1
$region0: #{tpu_custom_call.1}
  #allocation0 [shape = 'u32[]', space=smem, size = 0x4, offset = 0x4, fixed_abs, tag = 'smem constant byte address 0x4 - core index']
  #allocation1 [shape = 'u32[144,128]{1,0:T(1,128)}', space=vmem, size = 0x12000, scoped, tag = 'internal scratch']
  %s0 = inlined_call_operand.hbm [shape: f32[8,32], index: 0, kind: input, shape index: {}]
  %s1 = inlined_call_operand.hbm [shape: f32[8,32], index: 1, kind: input, shape index: {}]
  %s2 = inlined_call_operand.hbm [shape: f32[1,8], index: 2, kind: output, shape index: {}]
  %s3 = sld [smem:[#allocation0]]
  $region26: #{tpu_custom_call.1} parent=0
    _
  %s5 = ssub.s32 1, %s3
  %s6 = scalar_select 0, %s5, %s3
  $region1: #{tpu_custom_call.1} parent=0
    #allocation2 [shape = 'u8[4096]{0}', space=vmem, size = 0x1000, scoped, tag = 'input window, operand 0, single buffered']
    #allocation3 [shape = 's32[1]{0}', space=sflag, size = 0x4, scoped, tag = 'scoped memory for tpu_custom_call.1']
    #allocation4 [shape = 's32[1]{0}', space=sflag, size = 0x4, scoped, tag = 'scoped memory for tpu_custom_call.1']
    #allocation5 [shape = 'u8[4096]{0}', space=vmem, size = 0x1000, scoped, tag = 'input window, operand 1, single buffered']
    #allocation6 [shape = 's32[1]{0}', space=sflag, size = 0x4, scoped, tag = 'scoped memory for tpu_custom_call.1']
    #allocation7 [shape = 'u8[512]{0}', space=vmem, size = 0x400, scoped, tag = 'output window, operand 0, single buffered']
    %7 = vsyncpa [#allocation3], 0
    %8 = vsyncpa [#allocation6], 0
    %9 = vsyncpa [#allocation4], 0
    // Predicated region
    $region2: #{tpu_custom_call.1} parent=1 // pred_check
      _
    $region3: #{tpu_custom_call.1} parent=1 // pred_check_branch
      %11 = sbr.rel (0) target = $region5
    $region4: #{tpu_custom_call.1} parent=1 // pred_region
      %s13 = ssub.s32 128, 128
      %14 = vsyncadd [#allocation3], %s13
      %s16 = sshll.u32 [#allocation2], 4
      %s17 = int_to_ptr.vmem [resolvable:$true] %s16
      %19 = dma.hbm_to_vmem [thread:$0]  %s0, 128, %s17, [#allocation3]
    $region5: #{tpu_custom_call.1} parent=1 // pred_fallthru
      _
    // Predicated region
    $region6: #{tpu_custom_call.1} parent=1 // pred_check
      _
    $region7: #{tpu_custom_call.1} parent=1 // pred_check_branch
      %21 = sbr.rel (0) target = $region9
    $region8: #{tpu_custom_call.1} parent=1 // pred_region
      %s23 = ssub.s32 128, 128
      %24 = vsyncadd [#allocation6], %s23
      %s26 = sshll.u32 [#allocation5], 4
      %s27 = int_to_ptr.vmem [resolvable:$true] %s26
      %29 = dma.hbm_to_vmem [thread:$0]  %s1, 128, %s27, [#allocation6]
    $region9: #{tpu_custom_call.1} parent=1 // pred_fallthru
      _
    // Predicated region
    $region10: #{tpu_custom_call.1} parent=1 // pred_check
      _
    $region11: #{tpu_custom_call.1} parent=1 // pred_check_branch
      %31 = sbr.rel (0) target = $region13
    $region12: #{tpu_custom_call.1} parent=1 // pred_region
      %32 = dma.done [#allocation3], 128
    $region13: #{tpu_custom_call.1} parent=1 // pred_fallthru
      _
    // Predicated region
    $region14: #{tpu_custom_call.1} parent=1 // pred_check
      _
    $region15: #{tpu_custom_call.1} parent=1 // pred_check_branch
      %34 = sbr.rel (0) target = $region17
    $region16: #{tpu_custom_call.1} parent=1 // pred_region
      %35 = dma.done [#allocation6], 128
    $region17: #{tpu_custom_call.1} parent=1 // pred_fallthru
      _
    %v36 = vld [vmem:[#allocation2] sm:$0xff]
    %v37 = vld [vmem:[#allocation5] sm:$0xff]
    %v38 = vsub.f32 %v36, %v37
    %v39 = vadd.f32 %v38, 1e-06
    %v40 = vmul.f32 %v39, %v39
    %vm41 = vcmask 261120
    %v42 = vsel %vm41, %v40, 0.0
    %43 = vadd.xlane.f32.xlu0 %v42
    %v44 = vpop.xlane.xlu0 %43
    %v45 = vrsqrt.pop %v44
    %v46 = vmul.f32 %v44, %v45
    %vm47 = vcmp.eq.f32.partialorder %v44, inf
    %v48 = vsel %vm47, %v44, %v46
    %vm49 = vcmp.eq.f32.partialorder %v44, 0.0
    %v50 = vand.u32 %v44, 2147483648
    %v51 = vsel %vm49, %v50, %v48
    %v53 = vlaneseq
    %v54 = vand.u32 %v53, 127
    %v55 = vlaneseq
    %v56 = vshrl.u32 %v55, 7
    %v57 = vsub.s32 %v54, %v56
    %v58 = vrot.slane %v51, %v57
    %vm60 = vcmask 57344
    %61 = vst.msk [vmem:[#allocation7] sm:$0x1] %vm60, %v58
    // Predicated region
    $region18: #{tpu_custom_call.1} parent=1 // pred_check
      _
    $region19: #{tpu_custom_call.1} parent=1 // pred_check_branch
      %63 = sbr.rel (0) target = $region21
    $region20: #{tpu_custom_call.1} parent=1 // pred_region
      %s65 = ssub.s32 16, 16
      %66 = vsyncadd [#allocation4], %s65
      %s68 = sshll.u32 [#allocation7], 4
      %s69 = int_to_ptr.vmem [resolvable:$true] %s68
      %71 = dma.vmem_to_hbm [thread:$0]  %s69, 16, %s2, [#allocation4]
    $region21: #{tpu_custom_call.1} parent=1 // pred_fallthru
      _
    // Predicated region
    $region22: #{tpu_custom_call.1} parent=1 // pred_check
      _
    $region23: #{tpu_custom_call.1} parent=1 // pred_check_branch
      %73 = sbr.rel (0) target = $region25
    $region24: #{tpu_custom_call.1} parent=1 // pred_region
      %74 = dma.done [#allocation4], 16
    $region25: #{tpu_custom_call.1} parent=1 // pred_fallthru
      _
    %75 = vsyncpa [#allocation3], 1
    %76 = vsyncpa [#allocation6], 1
    %77 = vsyncpa [#allocation4], 1

</llo_original>
